<compile_context>
chip_gen: v5e
topology: v5e:2x2
jax: 0.10.0
libtpu: 0.0.40
codegen_flags: <defaults>
</compile_context>

<pallas_src>
import functools

import jax
import jax.numpy as jnp
from jax import lax
from jax.experimental import pallas as pl
from jax.experimental.pallas import tpu as pltpu

_EPS = 1e-5


# --------------------------------------------------------------------------
# hardware / budget helpers
# --------------------------------------------------------------------------
def _vmem_capacity_bytes():
    """Physical VMEM per core (generation-aware); conservative fallback."""
    try:
        cap = int(getattr(pltpu.get_tpu_info(), "vmem_capacity_bytes"))
        if cap > 0:
            return cap
    except Exception:
        pass
    return 64 * 1024 * 1024  # v7x-sized fallback; v5e/v6e actually have 128 MiB


def _vmem_limit(resident_bytes, vmem_cap):
    """Scoped-VMEM limit derived from the chosen blocks, capped under physical."""
    usable = int(0.78 * vmem_cap)
    want = int(1.15 * resident_bytes) + (2 << 20)  # headroom for Mosaic scratch
    return int(max(16 << 20, min(usable, want)))


def _sublane_pack(itemsize):
    # rows per packed vreg tile: 8 for f32, 16 for bf16, 32 for int8/fp8
    return max(8, 32 // int(itemsize))


# --------------------------------------------------------------------------
# layout / tile selection
# --------------------------------------------------------------------------
def _choose_layout(hw, c, pack):
    """Pick (lane, rows, glane) for the per-sample (rows, lane) view.

    Preference:
      1. 128-multiple divisor of H*W   -> per-row gamma/beta (glane == 1)
      2. 128-multiple divisor of C*H*W -> full (rows, lane) gamma/beta maps
      3. lane == H*W (rows == C)       -> per-row gamma/beta, masked stores
    """
    total = c * hw

    def pick(div_of):
        cands = [d for d in range(128, min(div_of, 1024) + 1, 128) if div_of % d == 0]
        if not cands:
            return None
        good = [d for d in cands if (total // d) % pack == 0]  # dtype-aware sublane pack
        pool = good if good else cands
        pool_le = [d for d in pool if d <= 512]
        return max(pool_le) if pool_le else min(pool)

    lane = pick(hw)
    if lane is None and total % 128 == 0:
        lane = pick(total)
    if lane is None:
        lane = hw  # tiny / odd spatial dims: masked stores, but correct
    rows = total // lane
    glane = 1 if hw % lane == 0 else lane
    return lane, rows, glane


def _choose_batch_tile(n, sample_bytes, vmem_per_sample, target_bytes, usable_vmem):
    divs = [d for d in range(1, n + 1) if n % d == 0]
    feas = [d for d in divs
            if d * vmem_per_sample <= usable_vmem
            and (d == 1 or d * sample_bytes <= target_bytes)]
    if not feas:
        feas = [1]
    for min_steps in (4, 2, 1):  # v7x megacore: prefer >= 2 grid steps per TensorCore
        pool = [d for d in feas if n // d >= min_steps]
        if pool:
            return max(pool)
    return 1


def _choose_row_tile(rows, lane, itemsize, pack, gb_elem_bytes, target_bytes,
                     usable_vmem, n_samples):
    """Pick the per-tile row count for the tiled two-pass path.

    Returns (tile_r, pad_rows).  tile_r is always a multiple of 8 so that
    (a) the stats kernel's sublane-group reshape is a pure view and
    (b) the (tile_r, glane) blocks satisfy the (8, 128) tiling rule.
    """
    def vmem_of(tr):
        # 2x double-buffered in + out x-blocks, ~2 f32 temps, gamma/beta blocks
        return tr * lane * (4 * itemsize + 8 + gb_elem_bytes)

    divs = [d for d in range(1, rows + 1) if rows % d == 0]
    for align in (pack, 8):
        feas = [d for d in divs
                if d % align == 0
                and d * lane * itemsize <= target_bytes
                and vmem_of(d) <= usable_vmem]
        if feas:
            pref = [d for d in feas if n_samples * (rows // d) >= 4]
            return (max(pref) if pref else max(feas)), 0
    # No aligned divisor fits: pad rows up to a multiple of an aligned tile.
    tr = max(pack, (target_bytes // (lane * itemsize)) // pack * pack)
    while tr > pack and vmem_of(tr) > usable_vmem:
        tr -= pack
    tr = min(tr, ((rows + pack - 1) // pack) * pack)
    return tr, (-rows) % tr


# --------------------------------------------------------------------------
# Path A: single-pass (whole sample(s) per grid step)
# --------------------------------------------------------------------------
def _gn_small_kernel(x_ref, g_ref, b_ref, o_ref, *, inv_count, eps, fn):
    x = x_ref[...].astype(jnp.float32)                       # (BT, R, L)
    mean = jnp.sum(jnp.sum(x, axis=2, keepdims=True), axis=1, keepdims=True) * inv_count
    xc = x - mean
    # two-pass (shifted) variance: robust vs E[x^2]-mean^2 cancellation and
    # only adds VPU work that hides under the HBM-bound DMA.
    var = jnp.sum(jnp.sum(xc * xc, axis=2, keepdims=True), axis=1, keepdims=True) * inv_count
    rstd = lax.rsqrt(var + eps)
    g = g_ref[...].astype(jnp.float32)[None]                 # (1, R, GL)
    b = b_ref[...].astype(jnp.float32)[None]
    y = xc * rstd * g + b
    if fn is not None:
        y = fn(y)                                            # fused elementwise fn
    o_ref[...] = y.astype(o_ref.dtype)


def _gn_small(x3, g2, b2, eps, fn, target_bytes, usable_vmem, vmem_cap):
    n, rows, lane = x3.shape
    glane = g2.shape[1]
    itemsize = jnp.dtype(x3.dtype).itemsize
    sample_bytes = rows * lane * itemsize
    gb_vmem = 4 * rows * glane * 4                        # 2 arrays x 2 buffers
    vmem_per_sample = rows * lane * (4 * itemsize + 12)   # 2in+2out bufs + ~3 f32 temps
    bt = _choose_batch_tile(n, sample_bytes, vmem_per_sample, target_bytes,
                            usable_vmem - gb_vmem)
    limit = _vmem_limit(bt * vmem_per_sample + gb_vmem, vmem_cap)

    kern = functools.partial(_gn_small_kernel,
                             inv_count=1.0 / float(rows * lane),
                             eps=float(eps), fn=fn)
    return pl.pallas_call(
        kern,
        out_shape=jax.ShapeDtypeStruct((n, rows, lane), x3.dtype),
        grid_spec=pltpu.PrefetchScalarGridSpec(
            num_scalar_prefetch=0,
            grid=(n // bt,),
            in_specs=[
                pl.BlockSpec((bt, rows, lane), lambda i: (i, 0, 0)),
                pl.BlockSpec((rows, glane), lambda i: (0, 0)),   # fetched once
                pl.BlockSpec((rows, glane), lambda i: (0, 0)),
            ],
            out_specs=pl.BlockSpec((bt, rows, lane), lambda i: (i, 0, 0)),
        ),
        compiler_params=pltpu.CompilerParams(
            dimension_semantics=("parallel",),
            vmem_limit_bytes=limit,
        ),
    )(x3, g2, b2)


# --------------------------------------------------------------------------
# Path B: tiled two-pass (sum/sumsq reduction, then normalize+affine)
# --------------------------------------------------------------------------
def _stats_kernel(x_ref, s_ref, s2_ref):
    t = pl.program_id(1)

    @pl.when(t == 0)
    def _():
        s_ref[...] = jnp.zeros_like(s_ref)
        s2_ref[...] = jnp.zeros_like(s2_ref)

    x = x_ref[...].astype(jnp.float32)            # (1, TILE_R, L)
    tr, lane = x.shape[1], x.shape[2]
    # Group rows into sublane-sized chunks and accumulate (8, L) partials into
    # the resident output block: pure vreg-wise VPU adds (no per-tile scalar
    # broadcast / full cross-lane reduce) and a wider f32 summation tree.
    xg = x.reshape(tr // 8, 8, lane)
    s_ref[...] += jnp.sum(xg, axis=0)[None]
    s2_ref[...] += jnp.sum(xg * xg, axis=0)[None]


def _affine_kernel(x_ref, g_ref, b_ref, mean_ref, rstd_ref, o_ref, *, fn):
    bi = pl.program_id(0)
    mean = mean_ref[bi]                           # per-sample scalars from SMEM
    rstd = rstd_ref[bi]
    g = g_ref[...].astype(jnp.float32)            # (TILE_R, GL)
    b = b_ref[...].astype(jnp.float32)
    scale = g * rstd                              # per-row coefficient fold
    shift = b - mean * scale
    y = x_ref[...].astype(jnp.float32) * scale[None] + shift[None]
    if fn is not None:
        y = fn(y)                                 # fused elementwise fn
    o_ref[...] = y.astype(o_ref.dtype)


def _gn_tiled(x3, g2, b2, eps, fn, tile_r, pad_rows, vmem_cap):
    n, rows, lane = x3.shape
    glane = g2.shape[1]
    count = float(rows * lane)                    # true element count (pre-padding)
    if pad_rows:
        # Rare fallback (no 8-aligned divisor of rows fits): zero padding is
        # harmless for sum/sumsq; padded output rows are sliced off below.
        x3 = jnp.pad(x3, ((0, 0), (0, pad_rows), (0, 0)))
        g2 = jnp.pad(g2, ((0, pad_rows), (0, 0)))
        b2 = jnp.pad(b2, ((0, pad_rows), (0, 0)))
    rows_p = rows + pad_rows
    nt = rows_p // tile_r
    itemsize = jnp.dtype(x3.dtype).itemsize
    xblk = tile_r * lane * itemsize
    f32blk = tile_r * lane * 4

    # ---- pass 1: per-sample (8, lane) partial sum / sum-of-squares ----
    stats_limit = _vmem_limit(2 * xblk + 2 * f32blk + 4 * 8 * lane * 4, vmem_cap)
    sums, sqs = pl.pallas_call(
        _stats_kernel,
        out_shape=(jax.ShapeDtypeStruct((n, 8, lane), jnp.float32),
                   jax.ShapeDtypeStruct((n, 8, lane), jnp.float32)),
        grid_spec=pltpu.PrefetchScalarGridSpec(
            num_scalar_prefetch=0,
            grid=(n, nt),
            in_specs=[pl.BlockSpec((1, tile_r, lane), lambda bi, t: (bi, t, 0))],
            out_specs=(pl.BlockSpec((1, 8, lane), lambda bi, t: (bi, 0, 0)),
                       pl.BlockSpec((1, 8, lane), lambda bi, t: (bi, 0, 0))),
        ),
        compiler_params=pltpu.CompilerParams(
            dimension_semantics=("parallel", "arbitrary"),
            vmem_limit_bytes=stats_limit,
        ),
    )(x3)

    # tiny O(N) epilogue: finish the reduction and per-sample statistics
    s = jnp.sum(sums, axis=(1, 2))
    s2 = jnp.sum(sqs, axis=(1, 2))
    mean = s / count
    var = jnp.maximum(s2 / count - mean * mean, 0.0)
    rstd = lax.rsqrt(var + eps)

    # ---- pass 2: elementwise normalize + affine (+ fused fn), fully parallel.
    # Per-sample mean/rstd ride in SMEM (N scalars each); gamma/beta stay as
    # small per-row blocks -- no (N, R) scale/shift HBM round-trip.
    affine_limit = _vmem_limit(4 * xblk + 2 * f32blk + 4 * tile_r * glane * 4, vmem_cap)
    out3 = pl.pallas_call(
        functools.partial(_affine_kernel, fn=fn),
        out_shape=jax.ShapeDtypeStruct((n, rows_p, lane), x3.dtype),
        grid_spec=pltpu.PrefetchScalarGridSpec(
            num_scalar_prefetch=0,
            grid=(n, nt),
            in_specs=[
                pl.BlockSpec((1, tile_r, lane), lambda bi, t: (bi, t, 0)),
                pl.BlockSpec((tile_r, glane), lambda bi, t: (t, 0)),
                pl.BlockSpec((tile_r, glane), lambda bi, t: (t, 0)),
                pl.BlockSpec(memory_space=pltpu.MemorySpace.SMEM),
                pl.BlockSpec(memory_space=pltpu.MemorySpace.SMEM),
            ],
            out_specs=pl.BlockSpec((1, tile_r, lane), lambda bi, t: (bi, t, 0)),
        ),
        compiler_params=pltpu.CompilerParams(
            dimension_semantics=("parallel", "parallel"),
            vmem_limit_bytes=affine_limit,
        ),
    )(x3, g2, b2, mean.astype(jnp.float32), rstd.astype(jnp.float32))
    if pad_rows:
        out3 = out3[:, :rows]
    return out3


# --------------------------------------------------------------------------
# public entry points
# --------------------------------------------------------------------------
def groupnorm1(x, gamma, beta, *, eps=_EPS, elementwise_fn=None,
               single_pass_max_bytes=None, target_block_bytes=None):
    """GroupNorm(num_groups=1, num_channels=C) on NCHW input via Pallas TPU."""
    n, c, h, w = x.shape
    hw = h * w
    itemsize = jnp.dtype(x.dtype).itemsize
    pack = _sublane_pack(itemsize)

    vmem_cap = _vmem_capacity_bytes()
    usable_vmem = int(0.75 * vmem_cap)
    if target_block_bytes is None:
        # ~4 MiB DMA blocks on 64 MiB-VMEM parts (v7x), ~8 MiB on 128 MiB parts
        target_block_bytes = (8 << 20) if vmem_cap >= (100 << 20) else (4 << 20)

    lane, rows, glane = _choose_layout(hw, c, pack)
    x3 = x.reshape(n, rows, lane)

    gamma32 = gamma.reshape(-1).astype(jnp.float32)
    beta32 = beta.reshape(-1).astype(jnp.float32)
    if glane == 1:
        rep = hw // lane                          # each row belongs to one channel
        g2 = jnp.repeat(gamma32, rep).reshape(rows, 1)
        b2 = jnp.repeat(beta32, rep).reshape(rows, 1)
    else:
        g2 = jnp.repeat(gamma32, hw).reshape(rows, lane)   # full per-position maps
        b2 = jnp.repeat(beta32, hw).reshape(rows, lane)

    sample_bytes = rows * lane * itemsize
    gb_vmem = 4 * rows * glane * 4
    if single_pass_max_bytes is None:
        # Generation-aware single-pass cutoff: a whole sample (2 in + 2 out
        # double-buffered blocks + ~3 f32 temporaries + resident gamma/beta)
        # must fit usable VMEM -> ~7 MiB/sample on v7x, ~14 MiB on v5e/v6e.
        nelem_max = max(0, usable_vmem - gb_vmem - (2 << 20)) // (4 * itemsize + 12)
        single_pass_max_bytes = nelem_max * itemsize

    if sample_bytes <= single_pass_max_bytes:
        out3 = _gn_small(x3, g2, b2, eps, elementwise_fn,
                         target_block_bytes, usable_vmem, vmem_cap)
    else:
        gb_elem = 16 if glane == lane else 0
        tile_r, pad_rows = _choose_row_tile(rows, lane, itemsize, pack, gb_elem,
                                            target_block_bytes, usable_vmem, n)
        out3 = _gn_tiled(x3, g2, b2, eps, elementwise_fn, tile_r, pad_rows, vmem_cap)
    return out3.reshape(n, c, h, w)


def pre_norm(x, gamma, beta, fn=None, *, fuse_fn=False, **gn_kwargs):
    """PreNorm.forward: fn(GroupNorm(1, dim)(x)).

    `fn` is an arbitrary user module in PyTorch; here it is a plain-JAX
    callable.  If `fuse_fn=True` (valid only for elementwise fn) it is fused
    into the kernel epilogue, saving one full HBM read+write of the activation.
    """
    # TODO(synk): non-elementwise `fn` (conv / attention blocks) stays a plain
    # JAX call applied after the Pallas GroupNorm; only elementwise fns fuse.
    if fn is not None and fuse_fn:
        return groupnorm1(x, gamma, beta, elementwise_fn=fn, **gn_kwargs)
    y = groupnorm1(x, gamma, beta, **gn_kwargs)
    return fn(y) if fn is not None else y


def _reference_groupnorm1(x, gamma, beta):
    n, c, h, w = x.shape
    xf = x.reshape(n, -1).astype(jnp.float32)
    mean = xf.mean(axis=1, keepdims=True)
    var = ((xf - mean) ** 2).mean(axis=1, keepdims=True)
    xn = ((xf - mean) / jnp.sqrt(var + _EPS)).reshape(n, c, h, w)
    return xn * gamma.reshape(1, c, 1, 1) + beta.reshape(1, c, 1, 1)


if __name__ == "__main__":
    key = jax.random.PRNGKey(0)

    def run_case(idx, shape, fn=None, fuse=False, **kw):
        n, c, h, w = shape
        kx, kg, kb = jax.random.split(jax.random.fold_in(key, idx), 3)
        x = jax.random.normal(kx, shape, dtype=jnp.float32)
        # GroupNorm default init is weight=1, bias=0; perturb deterministically
        # so the affine path is actually exercised.
        gamma = 1.0 + 0.1 * jax.random.normal(kg, (c,), dtype=jnp.float32)
        beta = 0.1 * jax.random.normal(kb, (c,), dtype=jnp.float32)

        out = pre_norm(x, gamma, beta, fn=fn, fuse_fn=fuse, **kw)
        out = jax.block_until_ready(out)

        ref = _reference_groupnorm1(x, gamma, beta)
        if fn is not None:
            ref = fn(ref)
        assert out.shape == shape
        err = float(jnp.max(jnp.abs(out - ref)))
        assert err < 5e-4, f"case {idx} {shape}: mismatch vs reference (max err {err})"

    run_case(0, (2, 4, 16, 16))                                    # single-pass path
    run_case(1, (2, 8, 32, 32),                                    # forced tiled two-pass
             single_pass_max_bytes=16 * 1024, target_block_bytes=16 * 1024)
    run_case(2, (4, 3, 8, 8))                                      # lane = H*W fallback layout
    run_case(3, (2, 8, 4, 4))                                      # full (rows, lane) gamma map
    run_case(4, (2, 4, 12, 32),                                    # tiled + padded-rows fallback
             single_pass_max_bytes=4 * 1024, target_block_bytes=4 * 1024)
    run_case(5, (2, 4, 16, 16), fn=jax.nn.silu, fuse=True)         # fused elementwise fn

    print("KERNEL_OK")
</pallas_src>

<mosaic_0001>
module attributes {stable_mosaic.version = 11 : i64} {
  func.func @_gn_small_kernel(%arg0: i32, %arg1: memref<1x8x128xf32, #tpu.memory_space<vmem>>, %arg2: memref<8x1xf32, #tpu.memory_space<vmem>>, %arg3: memref<8x1xf32, #tpu.memory_space<vmem>>, %arg4: memref<1x8x128xf32, #tpu.memory_space<vmem>>) attributes {dimension_semantics = [#tpu.dimension_semantics<parallel>], iteration_bounds = array<i64: 2>, scalar_prefetch = 0 : i64, scratch_operands = 0 : i64, tpu.core_type = #tpu.core_type<tc>, window_params = [{transform_indices = @transform_0, window_bounds = array<i64: 1, 8, 128>}, {pipeline_mode = #tpu.pipeline_mode<synchronous>, transform_indices = @transform_1, window_bounds = array<i64: 8, 1>}, {pipeline_mode = #tpu.pipeline_mode<synchronous>, transform_indices = @transform_2, window_bounds = array<i64: 8, 1>}, {transform_indices = @transform_3, window_bounds = array<i64: 1, 8, 128>}]} {
    %c0 = arith.constant 0 : index
    %c0_0 = arith.constant 0 : index
    %c0_1 = arith.constant 0 : index
    %0 = vector.load %arg1[%c0, %c0_0, %c0_1] : memref<1x8x128xf32, #tpu.memory_space<vmem>>, vector<1x8x128xf32>
    %cst = arith.constant dense<0.000000e+00> : vector<1x8xf32>
    %1 = vector.multi_reduction <add>, %0, %cst [2] : vector<1x8x128xf32> to vector<1x8xf32>
    %2 = vector.shape_cast %1 : vector<1x8xf32> to vector<1x8x1xf32>
    %cst_2 = arith.constant dense<0.000000e+00> : vector<1x1xf32>
    %3 = vector.multi_reduction <add>, %2, %cst_2 [1] : vector<1x8x1xf32> to vector<1x1xf32>
    %4 = vector.shape_cast %3 : vector<1x1xf32> to vector<1x1x1xf32>
    %cst_3 = arith.constant 9.765625E-4 : f32
    %5 = vector.broadcast %cst_3 : f32 to vector<1x1x1xf32>
    %6 = arith.mulf %4, %5 : vector<1x1x1xf32>
    %7 = vector.broadcast %6 : vector<1x1x1xf32> to vector<1x8x128xf32>
    %8 = arith.subf %0, %7 : vector<1x8x128xf32>
    %9 = arith.mulf %8, %8 : vector<1x8x128xf32>
    %cst_4 = arith.constant dense<0.000000e+00> : vector<1x8xf32>
    %10 = vector.multi_reduction <add>, %9, %cst_4 [2] : vector<1x8x128xf32> to vector<1x8xf32>
    %11 = vector.shape_cast %10 : vector<1x8xf32> to vector<1x8x1xf32>
    %cst_5 = arith.constant dense<0.000000e+00> : vector<1x1xf32>
    %12 = vector.multi_reduction <add>, %11, %cst_5 [1] : vector<1x8x1xf32> to vector<1x1xf32>
    %13 = vector.shape_cast %12 : vector<1x1xf32> to vector<1x1x1xf32>
    %cst_6 = arith.constant 9.765625E-4 : f32
    %14 = vector.broadcast %cst_6 : f32 to vector<1x1x1xf32>
    %15 = arith.mulf %13, %14 : vector<1x1x1xf32>
    %cst_7 = arith.constant 9.99999974E-6 : f32
    %16 = vector.broadcast %cst_7 : f32 to vector<1x1x1xf32>
    %17 = arith.addf %15, %16 : vector<1x1x1xf32>
    %18 = math.rsqrt %17 : vector<1x1x1xf32>
    %c0_8 = arith.constant 0 : index
    %c0_9 = arith.constant 0 : index
    %19 = vector.load %arg2[%c0_8, %c0_9] : memref<8x1xf32, #tpu.memory_space<vmem>>, vector<8x1xf32>
    %20 = vector.shape_cast %19 : vector<8x1xf32> to vector<1x8x1xf32>
    %c0_10 = arith.constant 0 : index
    %c0_11 = arith.constant 0 : index
    %21 = vector.load %arg3[%c0_10, %c0_11] : memref<8x1xf32, #tpu.memory_space<vmem>>, vector<8x1xf32>
    %22 = vector.shape_cast %21 : vector<8x1xf32> to vector<1x8x1xf32>
    %23 = vector.broadcast %18 : vector<1x1x1xf32> to vector<1x8x128xf32>
    %24 = arith.mulf %8, %23 : vector<1x8x128xf32>
    %25 = vector.broadcast %20 : vector<1x8x1xf32> to vector<1x8x128xf32>
    %26 = arith.mulf %24, %25 : vector<1x8x128xf32>
    %27 = vector.broadcast %22 : vector<1x8x1xf32> to vector<1x8x128xf32>
    %28 = arith.addf %26, %27 : vector<1x8x128xf32>
    %c0_12 = arith.constant 0 : index
    %c0_13 = arith.constant 0 : index
    %c0_14 = arith.constant 0 : index
    %29 = vector.load %arg4[%c0_12, %c0_13, %c0_14] : memref<1x8x128xf32, #tpu.memory_space<vmem>>, vector<1x8x128xf32>
    tpu.vector_store %arg4[%c0_12, %c0_13, %c0_14], %28 {strides = array<i32>} : memref<1x8x128xf32, #tpu.memory_space<vmem>>, vector<1x8x128xf32>,
    return
  }
  func.func @transform_0(%arg0: i32) -> (i32, i32, i32) {
    %c0_i32 = arith.constant 0 : i32
    %c0_i32_0 = arith.constant 0 : i32
    %c0_i32_1 = arith.constant 0 : i32
    return %arg0, %c0_i32, %c0_i32_0 : i32, i32, i32
  }
  func.func @transform_1(%arg0: i32) -> (i32, i32) {
    %c0_i32 = arith.constant 0 : i32
    %c0_i32_0 = arith.constant 0 : i32
    %c0_i32_1 = arith.constant 0 : i32
    return %c0_i32, %c0_i32_0 : i32, i32
  }
  func.func @transform_2(%arg0: i32) -> (i32, i32) {
    %c0_i32 = arith.constant 0 : i32
    %c0_i32_0 = arith.constant 0 : i32
    %c0_i32_1 = arith.constant 0 : i32
    return %c0_i32, %c0_i32_0 : i32, i32
  }
  func.func @transform_3(%arg0: i32) -> (i32, i32, i32) {
    %c0_i32 = arith.constant 0 : i32
    %c0_i32_0 = arith.constant 0 : i32
    %c0_i32_1 = arith.constant 0 : i32
    return %arg0, %c0_i32, %c0_i32_0 : i32, i32, i32
  }
}

</mosaic_0001>

<llo_original>
// kernel: tpu_custom_call.1
$region0: #{tpu_custom_call.1}
  #allocation0 [shape = 'u32[]', space=smem, size = 0x4, offset = 0x4, fixed_abs, tag = 'smem constant byte address 0x4 - core index']
  #allocation1 [shape = 'u32[72,128]{1,0:T(1,128)}', space=vmem, size = 0x9000, scoped, tag = 'internal scratch']
  %s0 = inlined_call_operand.vmem [shape: f32[2,8,128], index: 0, kind: input, shape index: {}]
  %s1 = inlined_call_operand.vmem [shape: f32[8,1], index: 1, kind: input, shape index: {}]
  %s2 = inlined_call_operand.vmem [shape: f32[8,1], index: 2, kind: input, shape index: {}]
  %s3 = inlined_call_operand.hbm [shape: f32[2,8,128], index: 3, kind: output, shape index: {}]
  %s4 = sld [smem:[#allocation0]]
  $region45: #{tpu_custom_call.1} parent=0
    _
  %s6 = ssub.s32 1, %s4
  %s7 = scalar_select 0, %s6, %s4
  $region1: #{tpu_custom_call.1} parent=0
    #allocation2 [shape = 'u8[8192]{0}', space=vmem, size = 0x2000, scoped, tag = 'output window, operand 0']
    #allocation3 [shape = 's32[2]{0}', space=sflag, size = 0x8, scoped, tag = 'scoped memory for tpu_custom_call.1']
    %8 = vsyncpa [#allocation3], 0
    %s9 = scalar_lea.sflag [#allocation3], 1
    %10 = vsyncpa %s9, 0
    loop: start=0, step=1, limit=4
    $region2: #{tpu_custom_call.1} parent=1 // loop_pre_header
      _
    $region3: #{tpu_custom_call.1} parent=1 // loop_header
      %s12 = sphi 0, %s16
      %p13 = scmp.ge.s32.totalorder %s12, 4
      %s22 = sphi 0, %s24
      %s25 = sphi 0, %s22
      %s26 = sphi 0, %s25
      %s42 = sphi 0, %s26
      %s46 = sphi 0, %s46
      %s48 = sphi 0, %s46
      %s49 = sphi 0, %s48
      %s63 = sphi 0, %s49
      %s67 = sphi 0, %s67
      %s69 = sphi 0, %s67
      %s70 = sphi 0, %s69
      %s84 = sphi 0, %s70
      %s90 = sphi 0, %s92
      %s93 = sphi 0, %s90
      %s94 = sphi 0, %s93
      %s110 = sphi 0, %s94
    $region4: #{tpu_custom_call.1} parent=1 // loop_header_branch
      %15 = sbr.rel (%p13) target = $region8
    $region5: #{tpu_custom_call.1} parent=1 // loop_body
      %s17 = ssub.s32 %s12, 1
      %s18 = ssub.s32 %s12, 2
      %s19 = sadd.s32 %s12, 1
      %s20 = ssub.s32 %s12, %s19
      %p21 = scmp.eq.s32.totalorder %s20, 0
      %s23 = sadd.s32 %s22, 1
      %s24 = scalar_select %p21, %s22, %s23
      %p27 = pneg %p21
      %p28 = scmp.eq.s32.totalorder %s12, 1
      %p29 = por %p27, %p28
      %p30 = scmp.ne.s32.totalorder %s22, %s25
      %p31 = scmp.eq.s32.totalorder %s12, 0
      %p32 = por %p30, %p31
      %p33 = scmp.ne.s32.totalorder %s22, %s25
      %p34 = scmp.eq.s32.totalorder %s17, 1
      %p35 = por %p33, %p34
      %p36 = scmp.ne.s32.totalorder %s25, %s26
      %p37 = scmp.eq.s32.totalorder %s17, 0
      %p38 = por %p36, %p37
      %p39 = scmp.ne.s32.totalorder %s25, %s26
      %p40 = scmp.eq.s32.totalorder %s18, 1
      %p41 = por %p39, %p40
      %p43 = scmp.ne.s32.totalorder %s26, %s42
      %p44 = scmp.eq.s32.totalorder %s18, 0
      %p45 = por %p43, %p44
      %s47 = sadd.s32 %s46, 1
      %p50 = scmp.eq.s32.totalorder %s12, 1
      %p51 = scmp.ne.s32.totalorder %s46, %s48
      %p52 = scmp.eq.s32.totalorder %s12, 0
      %p53 = por %p51, %p52
      %p54 = scmp.ne.s32.totalorder %s46, %s48
      %p55 = scmp.eq.s32.totalorder %s17, 1
      %p56 = por %p54, %p55
      %p57 = scmp.ne.s32.totalorder %s48, %s49
      %p58 = scmp.eq.s32.totalorder %s17, 0
      %p59 = por %p57, %p58
      %p60 = scmp.ne.s32.totalorder %s48, %s49
      %p61 = scmp.eq.s32.totalorder %s18, 1
      %p62 = por %p60, %p61
      %p64 = scmp.ne.s32.totalorder %s49, %s63
      %p65 = scmp.eq.s32.totalorder %s18, 0
      %p66 = por %p64, %p65
      %s68 = sadd.s32 %s67, 1
      %p71 = scmp.eq.s32.totalorder %s12, 1
      %p72 = scmp.ne.s32.totalorder %s67, %s69
      %p73 = scmp.eq.s32.totalorder %s12, 0
      %p74 = por %p72, %p73
      %p75 = scmp.ne.s32.totalorder %s67, %s69
      %p76 = scmp.eq.s32.totalorder %s17, 1
      %p77 = por %p75, %p76
      %p78 = scmp.ne.s32.totalorder %s69, %s70
      %p79 = scmp.eq.s32.totalorder %s17, 0
      %p80 = por %p78, %p79
      %p81 = scmp.ne.s32.totalorder %s69, %s70
      %p82 = scmp.eq.s32.totalorder %s18, 1
      %p83 = por %p81, %p82
      %p85 = scmp.ne.s32.totalorder %s70, %s84
      %p86 = scmp.eq.s32.totalorder %s18, 0
      %p87 = por %p85, %p86
      %s88 = ssub.s32 %s12, %s19
      %p89 = scmp.eq.s32.totalorder %s88, 0
      %s91 = sadd.s32 %s90, 1
      %s92 = scalar_select %p89, %s90, %s91
      %p95 = pneg %p89
      %p96 = scmp.eq.s32.totalorder %s12, 1
      %p97 = por %p95, %p96
      %p98 = scmp.ne.s32.totalorder %s90, %s93
      %p99 = scmp.eq.s32.totalorder %s12, 0
      %p100 = por %p98, %p99
      %p101 = scmp.ne.s32.totalorder %s90, %s93
      %p102 = scmp.eq.s32.totalorder %s17, 1
      %p103 = por %p101, %p102
      %p104 = scmp.ne.s32.totalorder %s93, %s94
      %p105 = scmp.eq.s32.totalorder %s17, 0
      %p106 = por %p104, %p105
      %p107 = scmp.ne.s32.totalorder %s93, %s94
      %p108 = scmp.eq.s32.totalorder %s18, 1
      %p109 = por %p107, %p108
      %p111 = scmp.ne.s32.totalorder %s94, %s110
      %p112 = scmp.eq.s32.totalorder %s18, 0
      %p113 = por %p111, %p112
      %p114 = scmp.le.s32.totalorder 1, %s12
      %p115 = scmp.lt.s32.totalorder %s12, 3
      %p116 = pnand %p114, %p115
      %p117 = pneg %p116
      // Predicated region
      $region9: #{tpu_custom_call.1} parent=5 // pred_check
        _
      $region10: #{tpu_custom_call.1} parent=5 // pred_check_branch
        %119 = sbr.rel (%p116) target = $region12
      $region11: #{tpu_custom_call.1} parent=5 // pred_region
        %s120 = ssub.s32 %s12, 1
        // Predicated region
        $region13: #{tpu_custom_call.1} parent=11 // pred_check
          %p121 = pneg %p59
        $region14: #{tpu_custom_call.1} parent=11 // pred_check_branch
          %123 = sbr.rel (%p121) target = $region16
        $region15: #{tpu_custom_call.1} parent=11 // pred_region
          _
        $region16: #{tpu_custom_call.1} parent=11 // pred_fallthru
          _
        // Predicated region
        $region17: #{tpu_custom_call.1} parent=11 // pred_check
          %p124 = pneg %p80
        $region18: #{tpu_custom_call.1} parent=11 // pred_check_branch
          %126 = sbr.rel (%p124) target = $region20
        $region19: #{tpu_custom_call.1} parent=11 // pred_region
          _
        $region20: #{tpu_custom_call.1} parent=11 // pred_fallthru
          _
      $region12: #{tpu_custom_call.1} parent=5 // pred_fallthru
        _
      %p127 = scmp.lt.s32.totalorder %s12, 2
      // Predicated region
      $region21: #{tpu_custom_call.1} parent=5 // pred_check
        %p128 = pneg %p127
      $region22: #{tpu_custom_call.1} parent=5 // pred_check_branch
        %130 = sbr.rel (%p128) target = $region24
      $region23: #{tpu_custom_call.1} parent=5 // pred_region
        // Predicated region
        $region25: #{tpu_custom_call.1} parent=23 // pred_check
          %p131 = pneg %p32
        $region26: #{tpu_custom_call.1} parent=23 // pred_check_branch
          %133 = sbr.rel (%p131) target = $region28
        $region27: #{tpu_custom_call.1} parent=23 // pred_region
          %p134 = scmp.lt.s32.totalorder %s12, 1
          %s135 = scalar_select %p134, %s12, 1
          %s136 = smul.addr %s135, 8
          %s137 = scalar_lea.vmem %s0, %s136
        $region28: #{tpu_custom_call.1} parent=23 // pred_fallthru
          _
      $region24: #{tpu_custom_call.1} parent=5 // pred_fallthru
        _
      %p138 = scmp.le.s32.totalorder 1, %s12
      %p139 = scmp.lt.s32.totalorder %s12, 3
      %p140 = pnand %p138, %p139
      %p141 = pneg %p140
      // Predicated region
      $region29: #{tpu_custom_call.1} parent=5 // pred_check
        _
      $region30: #{tpu_custom_call.1} parent=5 // pred_check_branch
        %143 = sbr.rel (%p140) target = $region32
      $region31: #{tpu_custom_call.1} parent=5 // pred_region
        %s144 = ssub.s32 %s12, 1
        %p145 = scmp.lt.s32.totalorder %s17, 1
        %s146 = scalar_select %p145, %s17, 1
        %s147 = smul.addr %s146, 8
        %s148 = scalar_lea.vmem %s0, %s147
        %p149 = pneg %p38
        %p150 = pneg %p35
        %p151 = pneg %p59
        %p152 = pneg %p56
        %p153 = pneg %p80
        %p154 = pneg %p77
        %p155 = pneg %p106
        %p156 = pneg %p103
        %s157 = sand.u32 %s93, 1
        %s158 = scalar_lea.sflag [#allocation3], %s157
        %s159 = sand.u32 %s93, 1
        %s160 = smul.addr %s159, 8
        %s161 = scalar_lea.vmem [#allocation2], %s160
        %p162 = scmp.lt.s32.totalorder %s17, 1
        %s163 = scalar_select %p162, %s17, 1
        %s164 = smul.addr %s163, 8
        %s165 = scalar_lea.vmem %s0, %s164
        %v166 = vld [vmem:[%s165] sm:$0xff]
        %167 = vadd.xlane.f32.xlu0 %v166
        %v168 = vpop.xlane.xlu0 %167
        %v169 = vrot.slane %v168, 4
        %v170 = vadd.f32 %v168, %v169
        %v171 = vrot.slane %v170, 2
        %v172 = vadd.f32 %v170, %v171
        %v173 = vrot.slane %v172, 1
        %v174 = vadd.f32 %v172, %v173
        %v175 = vmul.f32 %v174, 0.0009765625
        %v176 = vsub.f32 %v166, %v175
        %v177 = vmul.f32 %v176, %v176
        %178 = vadd.xlane.f32.xlu0 %v177
        %v179 = vpop.xlane.xlu0 %178
        %v180 = vrot.slane %v179, 4
        %v181 = vadd.f32 %v179, %v180
        %v182 = vrot.slane %v181, 2
        %v183 = vadd.f32 %v181, %v182
        %v184 = vrot.slane %v183, 1
        %v185 = vadd.f32 %v183, %v184
        %v186 = vmul.f32 %v185, 0.0009765625
        %v187 = vadd.f32 %v186, 1e-05
        %v188 = vrsqrt.pop %v187
        %v189 = vmul.f32 %v188, %v187
        %v190 = vmul.f32 %v189, %v188
        %v191 = vmul.f32 0.5, %v190
        %v192 = vsub.f32 1.5, %v191
        %v193 = vmul.f32 %v188, %v192
        %vm194 = vweird.f32 %v187
        %vm195 = vweird.f32 %v188
        %vm196 = vmor %vm194, %vm195
        %v197 = vsel %vm196, %v188, %v193
        %v198 = vld [vmem:[%s1] sm:$0xff]
        %v199 = vld [vmem:[%s2] sm:$0xff]
        %v200 = vmul.f32 %v176, %v197
        %202 = vset.pattern.permute.xlu0 0
        %203 = vperm.xlu0 %202, %v198
        %v204 = vpop.permute.xlu0 %203
        %v206 = vmul.f32 %v200, %v204
        %208 = vset.pattern.permute.xlu0 0
        %209 = vperm.xlu0 %208, %v199
        %v210 = vpop.permute.xlu0 %209
        %v212 = vadd.f32 %v206, %v210
        %213 = vst [vmem:[%s161] sm:$0xff] %v212
        %s214 = sand.u32 %s93, 1
        %s215 = scalar_lea.sflag [#allocation3], %s214
        %s216 = sand.u32 %s93, 1
        %s217 = smul.addr %s216, 8
        %s218 = scalar_lea.vmem [#allocation2], %s217
        // Predicated region
        $region33: #{tpu_custom_call.1} parent=31 // pred_check
          %p219 = pneg %p103
        $region34: #{tpu_custom_call.1} parent=31 // pred_check_branch
          %221 = sbr.rel (%p219) target = $region36
        $region35: #{tpu_custom_call.1} parent=31 // pred_region
          %223 = vsyncadd %s215, 0
          %s224 = smul.addr %s17, 8
          %s225 = scalar_lea.hbm %s3, %s224
          %s227 = sshll.u32 %s218, 4
          %s228 = int_to_ptr.vmem [resolvable:$true] %s227
          %s229 = sshll.u32 %s225, 4
          %s230 = int_to_ptr.hbm [resolvable:$true] %s229
          %232 = dma.vmem_to_hbm [thread:$0]  %s228, 128, %s230, %s215
        $region36: #{tpu_custom_call.1} parent=31 // pred_fallthru
          _
      $region32: #{tpu_custom_call.1} parent=5 // pred_fallthru
        _
      %p233 = scmp.le.s32.totalorder 2, %s12
      // Predicated region
      $region37: #{tpu_custom_call.1} parent=5 // pred_check
        %p234 = pneg %p233
      $region38: #{tpu_custom_call.1} parent=5 // pred_check_branch
        %236 = sbr.rel (%p234) target = $region40
      $region39: #{tpu_custom_call.1} parent=5 // pred_region
        %s237 = ssub.s32 %s12, 2
        // Predicated region
        $region41: #{tpu_custom_call.1} parent=39 // pred_check
          %p238 = pneg %p109
        $region42: #{tpu_custom_call.1} parent=39 // pred_check_branch
          %240 = sbr.rel (%p238) target = $region44
        $region43: #{tpu_custom_call.1} parent=39 // pred_region
          %s241 = sand.u32 %s94, 1
          %s242 = scalar_lea.sflag [#allocation3], %s241
          %s243 = sand.u32 %s94, 1
          %s244 = smul.addr %s243, 8
          %s245 = scalar_lea.vmem [#allocation2], %s244
          %247 = dma.done %s242, 128
        $region44: #{tpu_custom_call.1} parent=39 // pred_fallthru
          _
      $region40: #{tpu_custom_call.1} parent=5 // pred_fallthru
        _
    $region6: #{tpu_custom_call.1} parent=1 // loop_footer
      %s16 = sadd.s32 1, %s12
    $region7: #{tpu_custom_call.1} parent=1 // loop_footer_branch
      %11 = sbr.rel target = $region3
    $region8: #{tpu_custom_call.1} parent=1 // loop_exit
      _
    %248 = vsyncpa [#allocation3], 1
    %s249 = scalar_lea.sflag [#allocation3], 1
    %250 = vsyncpa %s249, 1

</llo_original>
